<compile_context>
chip_gen: v7x
topology: tpu7x:2x2x1
jax: 0.10.0
libtpu: 0.0.40
codegen_flags: <defaults>
</compile_context>

<pallas_src>
import functools
import math

import jax
import jax.numpy as jnp
from jax.experimental import pallas as pl
from jax.experimental.pallas import tpu as pltpu


_MIB = 1024 * 1024


def _round_up(x, m):
    return ((x + m - 1) // m) * m


def _cdiv(a, b):
    return -(-a // b)


@functools.lru_cache(maxsize=1)
def _vmem_capacity_bytes():
    """Physical VMEM per TensorCore; conservative 64 MiB fallback (v7x-safe)."""
    try:
        get_info = getattr(pltpu, "get_tpu_info", None)
        if get_info is not None:
            info = get_info()
            for name in ("vmem_capacity_bytes", "vmem_size_bytes", "vmem_bytes"):
                cap = getattr(info, name, None)
                if cap:
                    return int(cap)
    except Exception:
        pass
    return 64 * _MIB


def _vmem_limit(est_bytes):
    """Per-call scoped-VMEM request: estimate + margin, capped below physical."""
    phys = _vmem_capacity_bytes()
    return int(max(32 * _MIB, min(phys - 12 * _MIB, est_bytes + 24 * _MIB)))


# ---------------------------------------------------------------------------
# Kernel 1a: resident-basis DFT matmul (single K step, no accumulator).
# ---------------------------------------------------------------------------
def _stft_mag_resident_kernel(frames_ref, basis_ref, mag_ref, tsum_ref, *, f_pad):
    acc = jnp.dot(frames_ref[...], basis_ref[...],
                  preferred_element_type=jnp.float32)
    re = acc[:, :f_pad]
    im = acc[:, f_pad:]
    mag = jnp.sqrt(re * re + im * im)
    # Padded rows / frequency columns are exactly zero, so this tile sum only
    # contains valid STFT bins (used for the per-channel means).
    tsum_ref[...] = jnp.broadcast_to(jnp.sum(mag), (1, 1, 128))
    mag_ref[...] = mag.astype(mag_ref.dtype)


# ---------------------------------------------------------------------------
# Kernel 1b: K-tiled fallback (basis too big to keep resident in VMEM).
# ---------------------------------------------------------------------------
def _stft_mag_ktiled_kernel(frames_ref, basis_ref, mag_ref, tsum_ref, acc_ref,
                            *, f_pad):
    k = pl.program_id(1)

    @pl.when(k == 0)
    def _init():
        acc_ref[...] = jnp.zeros_like(acc_ref)

    acc_ref[...] += jnp.dot(frames_ref[...], basis_ref[...],
                            preferred_element_type=jnp.float32)

    @pl.when(k == pl.num_programs(1) - 1)
    def _finalize():
        acc = acc_ref[...]
        re = acc[:, :f_pad]
        im = acc[:, f_pad:]
        mag = jnp.sqrt(re * re + im * im)
        tsum_ref[...] = jnp.broadcast_to(jnp.sum(mag), (1, 1, 128))
        mag_ref[...] = mag.astype(mag_ref.dtype)


# ---------------------------------------------------------------------------
# Kernel 2: mean-normalised L1 partial sums (pure HBM streaming pass, bf16 in).
# ---------------------------------------------------------------------------
def _l1_kernel(inv_ref, magp_ref, magt_ref, psum_ref):
    i = pl.program_id(0)
    inv_p = inv_ref[0, i]   # 1 / (mean(pred_stft)   + 1e-8) for this block's channel
    inv_t = inv_ref[1, i]   # 1 / (mean(target_stft) + 1e-8)
    p = magp_ref[...].astype(jnp.float32)
    t = magt_ref[...].astype(jnp.float32)
    psum_ref[...] = jnp.broadcast_to(jnp.sum(jnp.abs(p * inv_p - t * inv_t)),
                                     (1, 1, 128))


# ---------------------------------------------------------------------------
# Glue: torch.stft(center=True, pad_mode='reflect') framing, rectangular win.
# ---------------------------------------------------------------------------
def _frame_signals(sig, n_fft, hop, n_frames):
    """sig: (rows, T) f32 -> (rows, n_frames, n_fft) bf16 frames where
    frame f = reflect_padded_signal[f*hop : f*hop + n_fft]."""
    rows, _ = sig.shape
    pad = n_fft // 2
    # TODO(synk): move this framing into kernel 1 (manual DMA of the hop-chunked
    # signal) to avoid materializing the 4x-overlapped frame matrix in HBM.
    x = jnp.pad(sig.astype(jnp.bfloat16), ((0, 0), (pad, pad)), mode="reflect")
    if n_fft == 4 * hop:
        # 75%-overlap frames: frame f = hop-sized chunks f, f+1, f+2, f+3.
        n_chunks = n_frames + 3
        chunks = x[:, : n_chunks * hop].reshape(rows, n_chunks, hop)
        return jnp.concatenate(
            [chunks[:, j:j + n_frames, :] for j in range(4)], axis=-1)
    # Generic fallback (n_fft not divisible by 4): explicit gather.
    idx = jnp.arange(n_frames)[:, None] * hop + jnp.arange(n_fft)[None, :]
    return jnp.take(x, idx, axis=1)


# ---------------------------------------------------------------------------
# Module-equivalent wrapper.
# ---------------------------------------------------------------------------
class MultiResSTFTLoss:
    """Multi-resolution STFT loss (JAX/Pallas version of the PyTorch module)."""

    def __init__(self, scales=(512, 1024, 2048, 4096)):
        self.scales = list(scales)
        self._basis_cache = {}

    # -- basis helpers -----------------------------------------------------
    def _basis_resident(self, n_fft, f_pad):
        """Can kernel 1 keep the whole [cos | -sin] basis resident in VMEM?"""
        basis_bytes = n_fft * 2 * f_pad * 2                     # bf16
        tm = 256
        est = (basis_bytes
               + 2 * tm * n_fft * 2                             # frames, 2 bufs
               + 2 * tm * f_pad * 2                             # mag out, 2 bufs
               + tm * 2 * f_pad * 4)                            # f32 dot result
        return est <= _vmem_capacity_bytes() - 32 * _MIB

    def _get_basis(self, n_fft, k_pad):
        """Cached one-sided rectangular-window DFT basis [cos | -sin], bf16,
        zero-padded.  Angles use exact modular reduction."""
        key = (n_fft, k_pad)
        basis = self._basis_cache.get(key)
        if basis is None:
            nfreq = n_fft // 2 + 1
            f_pad = _round_up(nfreq, 128)
            n = jnp.arange(n_fft, dtype=jnp.int32)[:, None]
            k = jnp.arange(nfreq, dtype=jnp.int32)[None, :]
            phase = ((n * k) % n_fft).astype(jnp.float32) * (2.0 * math.pi / n_fft)
            cos_m = jnp.pad(jnp.cos(phase),
                            ((0, k_pad - n_fft), (0, f_pad - nfreq)))
            sin_m = jnp.pad(-jnp.sin(phase),
                            ((0, k_pad - n_fft), (0, f_pad - nfreq)))
            basis = jnp.concatenate([cos_m, sin_m], axis=1).astype(jnp.bfloat16)
            self._basis_cache[key] = basis
        return basis

    # -- per-scale loss ------------------------------------------------------
    def _scale_loss(self, pred, target, n_fft):
        """pred/target: (B, C, T) f32.  Returns the sum over channels of the
        mean-normalised L1 STFT loss for this scale."""
        B, C, T = pred.shape
        hop = n_fft // 4
        nfreq = n_fft // 2 + 1
        n_frames = 1 + T // hop
        NG = 2 * C                      # (pred | target) x channel groups
        R_g = B * n_frames              # valid frame rows per group
        F_pad = _round_up(nfreq, 128)

        # ---- path & tiling selection (per chip / per scale) ----------------
        resident = self._basis_resident(n_fft, F_pad)
        TK = n_fft if resident else min(n_fft, 512)
        K_pad = _round_up(n_fft, TK)
        num_k = K_pad // TK

        row_cap = 256 if resident else 512
        n_tiles_per_group = _cdiv(R_g, row_cap)
        TM = _round_up(_cdiv(R_g, n_tiles_per_group), 16)      # 16..row_cap rows
        R_gp = _round_up(R_g, TM)
        tpg = R_gp // TM                                        # tiles per group
        num_row_tiles = NG * tpg

        # ---- glue: stack groups and frame the signals (bf16) ---------------
        sig = jnp.concatenate(
            [jnp.transpose(pred, (1, 0, 2)).reshape(C * B, T),
             jnp.transpose(target, (1, 0, 2)).reshape(C * B, T)], axis=0)
        frames = _frame_signals(sig, n_fft, hop, n_frames)     # (NG*B, nf, n_fft)
        frames = frames.reshape(NG, R_g, n_fft)
        frames = jnp.pad(
            frames, ((0, 0), (0, R_gp - R_g), (0, K_pad - n_fft))
        ).reshape(NG * R_gp, K_pad)

        basis = self._get_basis(n_fft, K_pad)                  # (K_pad, 2*F_pad)
        basis_bytes = K_pad * 2 * F_pad * 2

        mag_shape = jax.ShapeDtypeStruct((NG * R_gp, F_pad), jnp.bfloat16)
        tsum_shape = jax.ShapeDtypeStruct((num_row_tiles, 1, 128), jnp.float32)

        # ---- kernel 1: magnitudes (bf16 slab) + per-row-tile f32 sums ------
        if resident:
            vmem_est = (basis_bytes
                        + 2 * TM * K_pad * 2
                        + 2 * TM * F_pad * 2
                        + TM * 2 * F_pad * 4)
            mag, tsums = pl.pallas_call(
                functools.partial(_stft_mag_resident_kernel, f_pad=F_pad),
                grid=(num_row_tiles,),
                in_specs=[
                    pl.BlockSpec((TM, K_pad), lambda i: (i, 0)),
                    # Untiled, VMEM-resident basis: DMA'd from HBM once per call
                    # instead of once per row tile.
                    pl.BlockSpec(memory_space=pltpu.MemorySpace.VMEM),
                ],
                out_specs=[
                    pl.BlockSpec((TM, F_pad), lambda i: (i, 0)),
                    pl.BlockSpec((1, 1, 128), lambda i: (i, 0, 0)),
                ],
                out_shape=[mag_shape, tsum_shape],
                compiler_params=pltpu.CompilerParams(
                    dimension_semantics=("parallel",),
                    vmem_limit_bytes=_vmem_limit(vmem_est)),
            )(frames, basis)
        else:
            vmem_est = (2 * TM * TK * 2
                        + 2 * TK * 2 * F_pad * 2
                        + TM * 2 * F_pad * 4
                        + 2 * TM * F_pad * 2)
            mag, tsums = pl.pallas_call(
                functools.partial(_stft_mag_ktiled_kernel, f_pad=F_pad),
                grid=(num_row_tiles, num_k),
                in_specs=[
                    pl.BlockSpec((TM, TK), lambda i, k: (i, k)),
                    pl.BlockSpec((TK, 2 * F_pad), lambda i, k: (k, 0)),
                ],
                out_specs=[
                    pl.BlockSpec((TM, F_pad), lambda i, k: (i, 0)),
                    pl.BlockSpec((1, 1, 128), lambda i, k: (i, 0, 0)),
                ],
                out_shape=[mag_shape, tsum_shape],
                scratch_shapes=[pltpu.VMEM((TM, 2 * F_pad), jnp.float32)],
                compiler_params=pltpu.CompilerParams(
                    dimension_semantics=("parallel", "arbitrary"),
                    vmem_limit_bytes=_vmem_limit(vmem_est)),
            )(frames, basis)

        # ---- glue: per-(input, channel) means -> per-block inverse means ---
        count = jnp.float32(R_g * nfreq)                        # B*n_frames*nfreq
        group_sums = tsums[:, 0, 0].reshape(NG, tpg).sum(axis=1)
        inv = 1.0 / (group_sums / count + 1e-8)                 # (NG,) f32

        # ---- kernel 2: normalised L1 partial sums (large streaming blocks) -
        # Merge as many row tiles per grid step as fit ~12 MiB of buffered bf16
        # traffic, keeping each block inside one (input, channel) group.
        per_tile_bytes = TM * F_pad * 2 * 2 * 2    # pred+target, double buffered
        cap_d = max(1, (12 * _MIB) // per_tile_bytes)
        d = 1
        for cand in range(1, tpg + 1):
            if tpg % cand == 0 and cand <= cap_d:
                d = cand
        RB = TM * d
        bpg = tpg // d
        n_pred_blocks = C * bpg

        inv_tbl = jnp.stack(
            [jnp.repeat(inv[:C], bpg), jnp.repeat(inv[C:], bpg)], axis=0
        ).astype(jnp.float32)                                   # (2, n_pred_blocks)

        k2_est = 2 * 2 * RB * F_pad * 2
        psums = pl.pallas_call(
            _l1_kernel,
            grid=(n_pred_blocks,),
            in_specs=[
                pl.BlockSpec(memory_space=pltpu.MemorySpace.SMEM),
                pl.BlockSpec((RB, F_pad), lambda i: (i, 0)),
                pl.BlockSpec((RB, F_pad), lambda i: (i + n_pred_blocks, 0)),
            ],
            out_specs=pl.BlockSpec((1, 1, 128), lambda i: (i, 0, 0)),
            out_shape=jax.ShapeDtypeStruct((n_pred_blocks, 1, 128), jnp.float32),
            compiler_params=pltpu.CompilerParams(
                dimension_semantics=("parallel",),
                vmem_limit_bytes=_vmem_limit(k2_est)),
        )(inv_tbl, mag, mag)

        # Sum over channels of per-channel L1 means == total partial sum / count.
        return jnp.sum(psums[:, 0, 0]) / count

    # -- forward -------------------------------------------------------------
    def __call__(self, pred, target):
        pred = jnp.asarray(pred, jnp.float32)
        target = jnp.asarray(target, jnp.float32)

        if pred.ndim == 3 and pred.shape[1] == 2:
            p3, t3 = pred, target
        elif pred.ndim == 2:
            p3, t3 = pred[:, None, :], target[:, None, :]
        elif pred.ndim == 1:
            p3, t3 = pred[None, None, :], target[None, None, :]
        else:
            # torch.stft raises for every scale in this case -> loss == 0.
            return jnp.float32(0.0)

        _, C, T = p3.shape
        total = jnp.float32(0.0)
        for scale in self.scales:
            # torch.stft (center=True, reflect pad) would raise for this scale;
            # the original module skips it via try/except.
            if scale < 4 or scale // 2 > T - 1:
                continue
            total = total + self._scale_loss(p3, t3, scale)
        return total / (len(self.scales) * C)


if __name__ == "__main__":
    key = jax.random.PRNGKey(0)
    k1, k2 = jax.random.split(key)

    # Small stereo example: (B, 2, T)
    B, C, T = 2, 2, 512
    pred = jax.random.normal(k1, (B, C, T), dtype=jnp.float32)
    target = jax.random.normal(k2, (B, C, T), dtype=jnp.float32)

    # Small scales consistent with the small T (module accepts scales in __init__).
    loss_fn = MultiResSTFTLoss(scales=[64, 128, 256])
    loss = loss_fn(pred, target)
    jax.block_until_ready(loss)

    # Also exercise the mono (B, T) branch.
    mono_loss = MultiResSTFTLoss(scales=[64, 128])(pred[:, 0, :], target[:, 0, :])
    jax.block_until_ready(mono_loss)

    print("KERNEL_OK")
</pallas_src>

<mosaic_0001>
module attributes {stable_mosaic.version = 11 : i64} {
  func.func @_stft_mag_resident_kernel(%arg0: i32, %arg1: memref<80x64xbf16, #tpu.memory_space<vmem>>, %arg2: memref<64x256xbf16, #tpu.memory_space<vmem>>, %arg3: memref<80x128xbf16, #tpu.memory_space<vmem>>, %arg4: memref<1x1x128xf32, #tpu.memory_space<vmem>>) attributes {dimension_semantics = [#tpu.dimension_semantics<parallel>], iteration_bounds = array<i64: 4>, scalar_prefetch = 0 : i64, scratch_operands = 0 : i64, tpu.core_type = #tpu.core_type<tc>, window_params = [{transform_indices = @transform_0, window_bounds = array<i64: 80, 64>}, {pipeline_mode = #tpu.pipeline_mode<synchronous>, transform_indices = @transform_1, window_bounds = array<i64: 64, 256>}, {transform_indices = @transform_2, window_bounds = array<i64: 80, 128>}, {transform_indices = @transform_3, window_bounds = array<i64: 1, 1, 128>}]} {
    %c0 = arith.constant 0 : index
    %c0_0 = arith.constant 0 : index
    %0 = vector.load %arg1[%c0, %c0_0] : memref<80x64xbf16, #tpu.memory_space<vmem>>, vector<80x64xbf16>
    %c0_1 = arith.constant 0 : index
    %c0_2 = arith.constant 0 : index
    %1 = vector.load %arg2[%c0_1, %c0_2] : memref<64x256xbf16, #tpu.memory_space<vmem>>, vector<64x256xbf16>
    %cst = arith.constant dense<0.000000e+00> : vector<80x256xf32>
    %2 = tpu.matmul %0, %1, %cst {dimension_numbers = #tpu.dot_dimension_numbers<[1], [0], [0], [1], [0, 0, 1, 1], [], []>} : vector<80x64xbf16>, vector<64x256xbf16>, vector<80x256xf32> -> vector<80x256xf32>
    %3 = vector.extract_strided_slice %2 {offsets = [0, 0], sizes = [80, 128], strides = [1, 1]} : vector<80x256xf32> to vector<80x128xf32>
    %4 = vector.extract_strided_slice %2 {offsets = [0, 128], sizes = [80, 128], strides = [1, 1]} : vector<80x256xf32> to vector<80x128xf32>
    %5 = arith.mulf %3, %3 : vector<80x128xf32>
    %6 = arith.mulf %4, %4 : vector<80x128xf32>
    %7 = arith.addf %5, %6 : vector<80x128xf32>
    %8 = math.sqrt %7 : vector<80x128xf32>
    %9 = vector.shape_cast %8 : vector<80x128xf32> to vector<1x80x128xf32>
    %cst_3 = arith.constant dense<0.000000e+00> : vector<1xf32>
    %10 = vector.multi_reduction <add>, %9, %cst_3 [1, 2] : vector<1x80x128xf32> to vector<1xf32>
    %11 = vector.shape_cast %10 : vector<1xf32> to vector<1x1x1xf32>
    %12 = vector.extract %11[0, 0, 0] : f32 from vector<1x1x1xf32>
    %13 = vector.broadcast %12 : f32 to vector<1x1x128xf32>
    %c0_4 = arith.constant 0 : index
    %c0_5 = arith.constant 0 : index
    %c0_6 = arith.constant 0 : index
    %14 = vector.load %arg4[%c0_4, %c0_5, %c0_6] : memref<1x1x128xf32, #tpu.memory_space<vmem>>, vector<1x1x128xf32>
    tpu.vector_store %arg4[%c0_4, %c0_5, %c0_6], %13 {strides = array<i32>} : memref<1x1x128xf32, #tpu.memory_space<vmem>>, vector<1x1x128xf32>,
    %15 = arith.truncf %8 : vector<80x128xf32> to vector<80x128xbf16>
    %c0_7 = arith.constant 0 : index
    %c0_8 = arith.constant 0 : index
    %16 = vector.load %arg3[%c0_7, %c0_8] : memref<80x128xbf16, #tpu.memory_space<vmem>>, vector<80x128xbf16>
    tpu.vector_store %arg3[%c0_7, %c0_8], %15 {strides = array<i32>} : memref<80x128xbf16, #tpu.memory_space<vmem>>, vector<80x128xbf16>,
    return
  }
  func.func @transform_0(%arg0: i32) -> (i32, i32) {
    %c0_i32 = arith.constant 0 : i32
    %c0_i32_0 = arith.constant 0 : i32
    return %arg0, %c0_i32 : i32, i32
  }
  func.func @transform_1(%arg0: i32) -> (i32, i32) {
    %c0_i32 = arith.constant 0 : i32
    %c0_i32_0 = arith.constant 0 : i32
    %c0_i32_1 = arith.constant 0 : i32
    return %c0_i32, %c0_i32_0 : i32, i32
  }
  func.func @transform_2(%arg0: i32) -> (i32, i32) {
    %c0_i32 = arith.constant 0 : i32
    %c0_i32_0 = arith.constant 0 : i32
    return %arg0, %c0_i32 : i32, i32
  }
  func.func @transform_3(%arg0: i32) -> (i32, i32, i32) {
    %c0_i32 = arith.constant 0 : i32
    %c0_i32_0 = arith.constant 0 : i32
    %c0_i32_1 = arith.constant 0 : i32
    return %arg0, %c0_i32, %c0_i32_0 : i32, i32, i32
  }
}

</mosaic_0001>

<llo_original>
// kernel: tpu_custom_call.1
$region0: #{tpu_custom_call.1}
  #allocation0 [shape = 'u32[]', space=smem, size = 0x4, offset = 0x4, fixed_abs, tag = 'smem constant byte address 0x4 - core index']
  #allocation1 [shape = 'u32[144,128]{1,0:T(1,128)}', space=vmem, size = 0x12000, scoped, tag = 'internal scratch']
  %s0 = inlined_call_operand.vmem [shape: bf16[320,64], index: 0, kind: input, shape index: {}]
  %s1 = inlined_call_operand.vmem [shape: bf16[64,256], index: 1, kind: input, shape index: {}]
  %s2 = inlined_call_operand.hbm [shape: bf16[320,128], index: 2, kind: output, shape index: {0}]
  %s3 = inlined_call_operand.hbm [shape: f32[4,1,128], index: 3, kind: output, shape index: {1}]
  %4 = xla_tuple %s2, %s3
  %s5 = sld [smem:[#allocation0]]
  $region49: #{tpu_custom_call.1} parent=0
    _
  %s7 = ssub.s32 1, %s5
  %s8 = scalar_select 0, %s7, %s5
  $region1: #{tpu_custom_call.1} parent=0
    #allocation2 [shape = 'u8[40960]{0}', space=vmem, size = 0xa000, scoped, tag = 'output window, operand 0']
    #allocation3 [shape = 's32[2]{0}', space=sflag, size = 0x8, scoped, tag = 'scoped memory for tpu_custom_call.1']
    #allocation4 [shape = 'u8[1024]{0}', space=vmem, size = 0x400, scoped, tag = 'output window, operand 1']
    #allocation5 [shape = 's32[2]{0}', space=sflag, size = 0x8, scoped, tag = 'scoped memory for tpu_custom_call.1']
    %9 = vsyncpa [#allocation3], 0
    %s10 = scalar_lea.sflag [#allocation3], 1
    %11 = vsyncpa %s10, 0
    %12 = vsyncpa [#allocation5], 0
    %s13 = scalar_lea.sflag [#allocation5], 1
    %14 = vsyncpa %s13, 0
    loop: start=0, step=1, limit=6
    $region2: #{tpu_custom_call.1} parent=1 // loop_pre_header
      _
    $region3: #{tpu_custom_call.1} parent=1 // loop_header
      %s16 = sphi 0, %s20
      %p17 = scmp.ge.s32.totalorder %s16, 6
      %s26 = sphi 0, %s28
      %s29 = sphi 0, %s26
      %s30 = sphi 0, %s29
      %s46 = sphi 0, %s30
      %s50 = sphi 0, %s50
      %s52 = sphi 0, %s50
      %s53 = sphi 0, %s52
      %s67 = sphi 0, %s53
      %s73 = sphi 0, %s75
      %s76 = sphi 0, %s73
      %s77 = sphi 0, %s76
      %s93 = sphi 0, %s77
      %s99 = sphi 0, %s101
      %s102 = sphi 0, %s99
      %s103 = sphi 0, %s102
      %s119 = sphi 0, %s103
    $region4: #{tpu_custom_call.1} parent=1 // loop_header_branch
      %19 = sbr.rel (%p17) target = $region8
    $region5: #{tpu_custom_call.1} parent=1 // loop_body
      %s21 = ssub.s32 %s16, 1
      %s22 = ssub.s32 %s16, 2
      %s23 = sadd.s32 %s16, 1
      %s24 = ssub.s32 %s16, %s23
      %p25 = scmp.eq.s32.totalorder %s24, 0
      %s27 = sadd.s32 %s26, 1
      %s28 = scalar_select %p25, %s26, %s27
      %p31 = pneg %p25
      %p32 = scmp.eq.s32.totalorder %s16, 3
      %p33 = por %p31, %p32
      %p34 = scmp.ne.s32.totalorder %s26, %s29
      %p35 = scmp.eq.s32.totalorder %s16, 0
      %p36 = por %p34, %p35
      %p37 = scmp.ne.s32.totalorder %s26, %s29
      %p38 = scmp.eq.s32.totalorder %s21, 3
      %p39 = por %p37, %p38
      %p40 = scmp.ne.s32.totalorder %s29, %s30
      %p41 = scmp.eq.s32.totalorder %s21, 0
      %p42 = por %p40, %p41
      %p43 = scmp.ne.s32.totalorder %s29, %s30
      %p44 = scmp.eq.s32.totalorder %s22, 3
      %p45 = por %p43, %p44
      %p47 = scmp.ne.s32.totalorder %s30, %s46
      %p48 = scmp.eq.s32.totalorder %s22, 0
      %p49 = por %p47, %p48
      %s51 = sadd.s32 %s50, 1
      %p54 = scmp.eq.s32.totalorder %s16, 3
      %p55 = scmp.ne.s32.totalorder %s50, %s52
      %p56 = scmp.eq.s32.totalorder %s16, 0
      %p57 = por %p55, %p56
      %p58 = scmp.ne.s32.totalorder %s50, %s52
      %p59 = scmp.eq.s32.totalorder %s21, 3
      %p60 = por %p58, %p59
      %p61 = scmp.ne.s32.totalorder %s52, %s53
      %p62 = scmp.eq.s32.totalorder %s21, 0
      %p63 = por %p61, %p62
      %p64 = scmp.ne.s32.totalorder %s52, %s53
      %p65 = scmp.eq.s32.totalorder %s22, 3
      %p66 = por %p64, %p65
      %p68 = scmp.ne.s32.totalorder %s53, %s67
      %p69 = scmp.eq.s32.totalorder %s22, 0
      %p70 = por %p68, %p69
      %s71 = ssub.s32 %s16, %s23
      %p72 = scmp.eq.s32.totalorder %s71, 0
      %s74 = sadd.s32 %s73, 1
      %s75 = scalar_select %p72, %s73, %s74
      %p78 = pneg %p72
      %p79 = scmp.eq.s32.totalorder %s16, 3
      %p80 = por %p78, %p79
      %p81 = scmp.ne.s32.totalorder %s73, %s76
      %p82 = scmp.eq.s32.totalorder %s16, 0
      %p83 = por %p81, %p82
      %p84 = scmp.ne.s32.totalorder %s73, %s76
      %p85 = scmp.eq.s32.totalorder %s21, 3
      %p86 = por %p84, %p85
      %p87 = scmp.ne.s32.totalorder %s76, %s77
      %p88 = scmp.eq.s32.totalorder %s21, 0
      %p89 = por %p87, %p88
      %p90 = scmp.ne.s32.totalorder %s76, %s77
      %p91 = scmp.eq.s32.totalorder %s22, 3
      %p92 = por %p90, %p91
      %p94 = scmp.ne.s32.totalorder %s77, %s93
      %p95 = scmp.eq.s32.totalorder %s22, 0
      %p96 = por %p94, %p95
      %s97 = ssub.s32 %s16, %s23
      %p98 = scmp.eq.s32.totalorder %s97, 0
      %s100 = sadd.s32 %s99, 1
      %s101 = scalar_select %p98, %s99, %s100
      %p104 = pneg %p98
      %p105 = scmp.eq.s32.totalorder %s16, 3
      %p106 = por %p104, %p105
      %p107 = scmp.ne.s32.totalorder %s99, %s102
      %p108 = scmp.eq.s32.totalorder %s16, 0
      %p109 = por %p107, %p108
      %p110 = scmp.ne.s32.totalorder %s99, %s102
      %p111 = scmp.eq.s32.totalorder %s21, 3
      %p112 = por %p110, %p111
      %p113 = scmp.ne.s32.totalorder %s102, %s103
      %p114 = scmp.eq.s32.totalorder %s21, 0
      %p115 = por %p113, %p114
      %p116 = scmp.ne.s32.totalorder %s102, %s103
      %p117 = scmp.eq.s32.totalorder %s22, 3
      %p118 = por %p116, %p117
      %p120 = scmp.ne.s32.totalorder %s103, %s119
      %p121 = scmp.eq.s32.totalorder %s22, 0
      %p122 = por %p120, %p121
      %p123 = scmp.le.s32.totalorder 1, %s16
      %p124 = scmp.lt.s32.totalorder %s16, 5
      %p125 = pnand %p123, %p124
      %p126 = pneg %p125
      // Predicated region
      $region9: #{tpu_custom_call.1} parent=5 // pred_check
        _
      $region10: #{tpu_custom_call.1} parent=5 // pred_check_branch
        %128 = sbr.rel (%p125) target = $region12
      $region11: #{tpu_custom_call.1} parent=5 // pred_region
        %s129 = ssub.s32 %s16, 1
        // Predicated region
        $region13: #{tpu_custom_call.1} parent=11 // pred_check
          %p130 = pneg %p63
        $region14: #{tpu_custom_call.1} parent=11 // pred_check_branch
          %132 = sbr.rel (%p130) target = $region16
        $region15: #{tpu_custom_call.1} parent=11 // pred_region
          _
        $region16: #{tpu_custom_call.1} parent=11 // pred_fallthru
          _
      $region12: #{tpu_custom_call.1} parent=5 // pred_fallthru
        _
      %p133 = scmp.lt.s32.totalorder %s16, 4
      // Predicated region
      $region17: #{tpu_custom_call.1} parent=5 // pred_check
        %p134 = pneg %p133
      $region18: #{tpu_custom_call.1} parent=5 // pred_check_branch
        %136 = sbr.rel (%p134) target = $region20
      $region19: #{tpu_custom_call.1} parent=5 // pred_region
        // Predicated region
        $region21: #{tpu_custom_call.1} parent=19 // pred_check
          %p137 = pneg %p36
        $region22: #{tpu_custom_call.1} parent=19 // pred_check_branch
          %139 = sbr.rel (%p137) target = $region24
        $region23: #{tpu_custom_call.1} parent=19 // pred_region
          %s140 = smul.u32 10, %s16
          %p141 = scmp.lt.s32.totalorder %s140, 39
          %s142 = scalar_select %p141, %s140, 39
          %s143 = smul.addr %s142, 4
          %s144 = scalar_lea.vmem %s0, %s143
          %s145 = smul.u32 10, %s16
        $region24: #{tpu_custom_call.1} parent=19 // pred_fallthru
          _
      $region20: #{tpu_custom_call.1} parent=5 // pred_fallthru
        _
      %p146 = scmp.le.s32.totalorder 1, %s16
      %p147 = scmp.lt.s32.totalorder %s16, 5
      %p148 = pnand %p146, %p147
      %p149 = pneg %p148
      // Predicated region
      $region25: #{tpu_custom_call.1} parent=5 // pred_check
        _
      $region26: #{tpu_custom_call.1} parent=5 // pred_check_branch
        %151 = sbr.rel (%p148) target = $region28
      $region27: #{tpu_custom_call.1} parent=5 // pred_region
        %s152 = ssub.s32 %s16, 1
        %s153 = smul.u32 10, %s21
        %p154 = scmp.lt.s32.totalorder %s153, 39
        %s155 = scalar_select %p154, %s153, 39
        %s156 = smul.addr %s155, 4
        %s157 = scalar_lea.vmem %s0, %s156
        %p158 = pneg %p42
        %p159 = pneg %p39
        %p160 = pneg %p63
        %p161 = pneg %p60
        %p162 = pneg %p89
        %p163 = pneg %p86
        %s164 = sand.u32 %s76, 1
        %s165 = scalar_lea.sflag [#allocation3], %s164
        %s166 = sand.u32 %s76, 1
        %s167 = smul.addr %s166, 40
        %s168 = scalar_lea.vmem [#allocation2], %s167
        %p169 = pneg %p115
        %p170 = pneg %p112
        %s171 = sand.u32 %s102, 1
        %s172 = scalar_lea.sflag [#allocation5], %s171
        %s173 = sand.u32 %s102, 1
        %s174 = scalar_lea.vmem [#allocation4], %s173
        %s175 = smul.u32 10, %s21
        %p176 = scmp.lt.s32.totalorder %s175, 39
        %s177 = scalar_select %p176, %s175, 39
        %s178 = smul.addr %s177, 4
        %s179 = scalar_lea.vmem %s0, %s178
        %s180 = smul.u32 10, %s21
        %s181 = smul.u32 10, %s21
        %v183 = vld [vmem:[%s179] sm:$0xf]
        %v184 = vld [vmem:[%s179 + $0x4] sm:$0xf]
        %v185 = vld [vmem:[%s179 + $0x8] sm:$0xf]
        %v186 = vld [vmem:[%s179 + $0xc] sm:$0xf]
        %v187 = vld [vmem:[%s179 + $0x10] sm:$0xf]
        %v188 = vld [vmem:[%s179 + $0x14] sm:$0xf]
        %v189 = vld [vmem:[%s179 + $0x18] sm:$0xf]
        %v190 = vld [vmem:[%s179 + $0x1c] sm:$0xf]
        %v191 = vld [vmem:[%s179 + $0x20] sm:$0xf]
        %v192 = vld [vmem:[%s179 + $0x24] sm:$0xf]
        %v193 = vld [vmem:[%s1] sm:$0xff]
        %v194 = vld [vmem:[%s1 + $0x8] sm:$0xff]
        %v195 = vld [vmem:[%s1 + $0x10] sm:$0xff]
        %v196 = vld [vmem:[%s1 + $0x18] sm:$0xff]
        %v197 = vld [vmem:[%s1 + $0x20] sm:$0xff]
        %v198 = vld [vmem:[%s1 + $0x28] sm:$0xff]
        %v199 = vld [vmem:[%s1 + $0x30] sm:$0xff]
        %v200 = vld [vmem:[%s1 + $0x38] sm:$0xff]
        %v211 = vunpack.c.l.b16 %v183
        %v212 = vunpack.c.l.b16 %v184
        %v213 = vunpack.c.l.b16 %v185
        %v214 = vunpack.c.l.b16 %v186
        %v215 = vunpack.c.l.b16 %v187
        %v216 = vunpack.c.l.b16 %v188
        %v217 = vunpack.c.l.b16 %v189
        %v218 = vunpack.c.l.b16 %v190
        %v219 = vunpack.c.l.b16 %v191
        %v220 = vunpack.c.l.b16 %v192
        %v221 = vpack.c.b16 %v212, %v211
        %v222 = vpack.c.b16 %v214, %v213
        %v223 = vpack.c.b16 %v216, %v215
        %v224 = vpack.c.b16 %v218, %v217
        %v225 = vpack.c.b16 %v220, %v219
        %v234 = vunpack.c.l.b16 %v193
        %v235 = vunpack.c.h.b16 %v193
        %v236 = vunpack.c.l.b16 %v194
        %v237 = vunpack.c.h.b16 %v194
        %v238 = vunpack.c.l.b16 %v195
        %v239 = vunpack.c.h.b16 %v195
        %v240 = vunpack.c.l.b16 %v196
        %v241 = vunpack.c.h.b16 %v196
        %v242 = vunpack.c.l.b16 %v197
        %v243 = vunpack.c.h.b16 %v197
        %v244 = vunpack.c.l.b16 %v198
        %v245 = vunpack.c.h.b16 %v198
        %v246 = vunpack.c.l.b16 %v199
        %v247 = vunpack.c.h.b16 %v199
        %v248 = vunpack.c.l.b16 %v200
        %v249 = vunpack.c.h.b16 %v200
        %v250 = vpack.c.b16 %v236, %v234
        %v251 = vpack.c.b16 %v237, %v235
        %v252 = vpack.c.b16 %v240, %v238
        %v253 = vpack.c.b16 %v241, %v239
        %v254 = vpack.c.b16 %v244, %v242
        %v255 = vpack.c.b16 %v245, %v243
        %v256 = vpack.c.b16 %v248, %v246
        %v257 = vpack.c.b16 %v249, %v247
        %vm266 = vcmask 523264
        %v268 = vsel %vm266, %v221, 0
        %v271 = vsel %vm266, %v222, 0
        %v274 = vsel %vm266, %v223, 0
        %v277 = vsel %vm266, %v224, 0
        %v280 = vsel %vm266, %v225, 0
        %282 = vmatprep.subr.bf16.mxu0 %v251
        %283 = vmatpush1.bf16.msra.mxu0 %v250
        %284 = vmatprep.subr.bf16.mxu0 %v253
        %285 = vmatpush1.bf16.msra.mxu0 %v252
        %286 = vmatprep.subr.bf16.mxu0 %v255
        %287 = vmatpush1.bf16.msra.mxu0 %v254
        %288 = vmatprep.subr.bf16.mxu0 %v257
        %289 = vmatpush1.bf16.msra.mxu0 %v256
        %290 = vmatprep.subr.bf16.mxu0 0
        %291 = vmatpush1.bf16.msra.mxu0 0
        %292 = vmatprep.subr.bf16.mxu0 0
        %293 = vmatpush1.bf16.msra.mxu0 0
        %294 = vmatprep.subr.bf16.mxu0 0
        %295 = vmatpush1.bf16.msra.mxu0 0
        %296 = vmatprep.subr.bf16.mxu0 0
        %297 = vmatpush1.bf16.msra.mxu0 0
        %298 = vmatprep.subr.bf16.mxu0 0
        %299 = vmatpush1.bf16.msra.mxu0 0
        %300 = vmatprep.subr.bf16.mxu0 0
        %301 = vmatpush1.bf16.msra.mxu0 0
        %302 = vmatprep.subr.bf16.mxu0 0
        %303 = vmatpush1.bf16.msra.mxu0 0
        %304 = vmatprep.subr.bf16.mxu0 0
        %305 = vmatpush1.bf16.msra.mxu0 0
        %306 = vmatprep.subr.bf16.mxu0 0
        %307 = vmatpush1.bf16.msra.mxu0 0
        %308 = vmatprep.subr.bf16.mxu0 0
        %309 = vmatpush1.bf16.msra.mxu0 0
        %310 = vmatprep.subr.bf16.mxu0 0
        %311 = vmatpush1.bf16.msra.mxu0 0
        %312 = vmatprep.subr.bf16.mxu0 0
        %313 = vmatpush1.bf16.msra.mxu0 0
        %314 = vmatprep.mubr.bf16.mxu0 0
        %315 = vmatmul.mubr.bf16.gmra.mrb[0].mxu0 %v268
        %v316 = vpop.f32.mrb[0].mxu0
        %v317 = vadd.f32 0.0, %v316
        %v318 = vpop.f32.mrb[0].mxu0
        %v319 = vadd.f32 0.0, %v318
        %v320 = vpop.f32.mrb[0].mxu0
        %v321 = vadd.f32 0.0, %v320
        %v322 = vpop.f32.mrb[0].mxu0
        %v323 = vadd.f32 0.0, %v322
        %324 = vmatprep.mubr.bf16.mxu0 0
        %325 = vmatmul.mubr.bf16.gmra.mrb[0].mxu0 %v271
        %v326 = vpop.f32.mrb[0].mxu0
        %v327 = vadd.f32 0.0, %v326
        %v328 = vpop.f32.mrb[0].mxu0
        %v329 = vadd.f32 0.0, %v328
        %v330 = vpop.f32.mrb[0].mxu0
        %v331 = vadd.f32 0.0, %v330
        %v332 = vpop.f32.mrb[0].mxu0
        %v333 = vadd.f32 0.0, %v332
        %334 = vmatprep.mubr.bf16.mxu0 0
        %335 = vmatmul.mubr.bf16.gmra.mrb[0].mxu0 %v274
        %v336 = vpop.f32.mrb[0].mxu0
        %v337 = vadd.f32 0.0, %v336
        %v338 = vpop.f32.mrb[0].mxu0
        %v339 = vadd.f32 0.0, %v338
        %v340 = vpop.f32.mrb[0].mxu0
        %v341 = vadd.f32 0.0, %v340
        %v342 = vpop.f32.mrb[0].mxu0
        %v343 = vadd.f32 0.0, %v342
        %344 = vmatprep.mubr.bf16.mxu0 0
        %345 = vmatmul.mubr.bf16.gmra.mrb[0].mxu0 %v277
        %v346 = vpop.f32.mrb[0].mxu0
        %v347 = vadd.f32 0.0, %v346
        %v348 = vpop.f32.mrb[0].mxu0
        %v349 = vadd.f32 0.0, %v348
        %v350 = vpop.f32.mrb[0].mxu0
        %v351 = vadd.f32 0.0, %v350
        %v352 = vpop.f32.mrb[0].mxu0
        %v353 = vadd.f32 0.0, %v352
        %354 = vmatprep.mubr.bf16.mxu0 0
        %355 = vmatmul.mubr.bf16.gmra.mrb[0].mxu0 %v280
        %v356 = vpop.f32.mrb[0].mxu0
        %v357 = vadd.f32 0.0, %v356
        %v358 = vpop.f32.mrb[0].mxu0
        %v359 = vadd.f32 0.0, %v358
        %v360 = vpop.f32.mrb[0].mxu0
        %v361 = vadd.f32 0.0, %v360
        %v362 = vpop.f32.mrb[0].mxu0
        %v363 = vadd.f32 0.0, %v362
        %364 = vdwg.mxu0
        %v365 = vmul.f32 %v317, %v317
        %v366 = vmul.f32 %v321, %v321
        %v367 = vmul.f32 %v327, %v327
        %v368 = vmul.f32 %v331, %v331
        %v369 = vmul.f32 %v337, %v337
        %v370 = vmul.f32 %v341, %v341
        %v371 = vmul.f32 %v347, %v347
        %v372 = vmul.f32 %v351, %v351
        %v373 = vmul.f32 %v357, %v357
        %v374 = vmul.f32 %v361, %v361
        %v375 = vmul.f32 %v319, %v319
        %v376 = vmul.f32 %v323, %v323
        %v377 = vmul.f32 %v329, %v329
        %v378 = vmul.f32 %v333, %v333
        %v379 = vmul.f32 %v339, %v339
        %v380 = vmul.f32 %v343, %v343
        %v381 = vmul.f32 %v349, %v349
        %v382 = vmul.f32 %v353, %v353
        %v383 = vmul.f32 %v359, %v359
        %v384 = vmul.f32 %v363, %v363
        %v385 = vadd.f32 %v365, %v375
        %v386 = vadd.f32 %v366, %v376
        %v387 = vadd.f32 %v367, %v377
        %v388 = vadd.f32 %v368, %v378
        %v389 = vadd.f32 %v369, %v379
        %v390 = vadd.f32 %v370, %v380
        %v391 = vadd.f32 %v371, %v381
        %v392 = vadd.f32 %v372, %v382
        %v393 = vadd.f32 %v373, %v383
        %v394 = vadd.f32 %v374, %v384
        %v395 = vrsqrt.pop %v385
        %v396 = vmul.f32 %v385, %v395
        %vm397 = vcmp.eq.f32.partialorder %v385, inf
        %v398 = vsel %vm397, %v385, %v396
        %vm399 = vcmp.eq.f32.partialorder %v385, 0.0
        %v400 = vand.u32 %v385, 2147483648
        %v401 = vsel %vm399, %v400, %v398
        %v402 = vrsqrt.pop %v386
        %v403 = vmul.f32 %v386, %v402
        %vm404 = vcmp.eq.f32.partialorder %v386, inf
        %v405 = vsel %vm404, %v386, %v403
        %vm406 = vcmp.eq.f32.partialorder %v386, 0.0
        %v407 = vand.u32 %v386, 2147483648
        %v408 = vsel %vm406, %v407, %v405
        %v409 = vrsqrt.pop %v387
        %v410 = vmul.f32 %v387, %v409
        %vm411 = vcmp.eq.f32.partialorder %v387, inf
        %v412 = vsel %vm411, %v387, %v410
        %vm413 = vcmp.eq.f32.partialorder %v387, 0.0
        %v414 = vand.u32 %v387, 2147483648
        %v415 = vsel %vm413, %v414, %v412
        %v416 = vrsqrt.pop %v388
        %v417 = vmul.f32 %v388, %v416
        %vm418 = vcmp.eq.f32.partialorder %v388, inf
        %v419 = vsel %vm418, %v388, %v417
        %vm420 = vcmp.eq.f32.partialorder %v388, 0.0
        %v421 = vand.u32 %v388, 2147483648
        %v422 = vsel %vm420, %v421, %v419
        %v423 = vrsqrt.pop %v389
        %v424 = vmul.f32 %v389, %v423
        %vm425 = vcmp.eq.f32.partialorder %v389, inf
        %v426 = vsel %vm425, %v389, %v424
        %vm427 = vcmp.eq.f32.partialorder %v389, 0.0
        %v428 = vand.u32 %v389, 2147483648
        %v429 = vsel %vm427, %v428, %v426
        %v430 = vrsqrt.pop %v390
        %v431 = vmul.f32 %v390, %v430
        %vm432 = vcmp.eq.f32.partialorder %v390, inf
        %v433 = vsel %vm432, %v390, %v431
        %vm434 = vcmp.eq.f32.partialorder %v390, 0.0
        %v435 = vand.u32 %v390, 2147483648
        %v436 = vsel %vm434, %v435, %v433
        %v437 = vrsqrt.pop %v391
        %v438 = vmul.f32 %v391, %v437
        %vm439 = vcmp.eq.f32.partialorder %v391, inf
        %v440 = vsel %vm439, %v391, %v438
        %vm441 = vcmp.eq.f32.partialorder %v391, 0.0
        %v442 = vand.u32 %v391, 2147483648
        %v443 = vsel %vm441, %v442, %v440
        %v444 = vrsqrt.pop %v392
        %v445 = vmul.f32 %v392, %v444
        %vm446 = vcmp.eq.f32.partialorder %v392, inf
        %v447 = vsel %vm446, %v392, %v445
        %vm448 = vcmp.eq.f32.partialorder %v392, 0.0
        %v449 = vand.u32 %v392, 2147483648
        %v450 = vsel %vm448, %v449, %v447
        %v451 = vrsqrt.pop %v393
        %v452 = vmul.f32 %v393, %v451
        %vm453 = vcmp.eq.f32.partialorder %v393, inf
        %v454 = vsel %vm453, %v393, %v452
        %vm455 = vcmp.eq.f32.partialorder %v393, 0.0
        %v456 = vand.u32 %v393, 2147483648
        %v457 = vsel %vm455, %v456, %v454
        %v458 = vrsqrt.pop %v394
        %v459 = vmul.f32 %v394, %v458
        %vm460 = vcmp.eq.f32.partialorder %v394, inf
        %v461 = vsel %vm460, %v394, %v459
        %vm462 = vcmp.eq.f32.partialorder %v394, 0.0
        %v463 = vand.u32 %v394, 2147483648
        %v464 = vsel %vm462, %v463, %v461
        %v465 = vadd.f32 %v401, %v408
        %v466 = vadd.f32 %v465, %v415
        %v467 = vadd.f32 %v466, %v422
        %v468 = vadd.f32 %v467, %v429
        %v469 = vadd.f32 %v468, %v436
        %v470 = vadd.f32 %v469, %v443
        %v471 = vadd.f32 %v470, %v450
        %v472 = vadd.f32 %v471, %v457
        %v473 = vadd.f32 %v472, %v464
        %474 = vadd.xlane.f32.xlu0 %v473
        %v475 = vpop.xlane.xlu0 %474
        %v476 = vrot.slane %v475, 4
        %v477 = vadd.f32 %v475, %v476
        %v478 = vrot.slane %v477, 2
        %v479 = vadd.f32 %v477, %v478
        %v480 = vrot.slane %v479, 1
        %v481 = vadd.f32 %v479, %v480
        %s482 = vtos %v481
        %v483 = vstv %s482
        %484 = vst [vmem:[%s174] sm:$0x1] %v483
        %v485 = vpack.c.bf16 %v408, %v401
        %v486 = vpack.c.bf16 %v422, %v415
        %v487 = vpack.c.bf16 %v436, %v429
        %v488 = vpack.c.bf16 %v450, %v443
        %v489 = vpack.c.bf16 %v464, %v457
        %v495 = vunpack.c.l.b16 %v485
        %v496 = vunpack.c.h.b16 %v485
        %v497 = vunpack.c.l.b16 %v486
        %v498 = vunpack.c.h.b16 %v486
        %v499 = vunpack.c.l.b16 %v487
        %v500 = vunpack.c.h.b16 %v487
        %v501 = vunpack.c.l.b16 %v488
        %v502 = vunpack.c.h.b16 %v488
        %v503 = vunpack.c.l.b16 %v489
        %v504 = vunpack.c.h.b16 %v489
        %v505 = vpack.c.b16 %v495, %v495
        %v506 = vpack.c.b16 %v496, %v496
        %v507 = vpack.c.b16 %v497, %v497
        %v508 = vpack.c.b16 %v498, %v498
        %v509 = vpack.c.b16 %v499, %v499
        %v510 = vpack.c.b16 %v500, %v500
        %v511 = vpack.c.b16 %v501, %v501
        %v512 = vpack.c.b16 %v502, %v502
        %v513 = vpack.c.b16 %v503, %v503
        %v514 = vpack.c.b16 %v504, %v504
        %525 = vst [vmem:[%s168] sm:$0xf] %v505
        %526 = vst [vmem:[%s168 + $0x4] sm:$0xf] %v506
        %527 = vst [vmem:[%s168 + $0x8] sm:$0xf] %v507
        %528 = vst [vmem:[%s168 + $0xc] sm:$0xf] %v508
        %529 = vst [vmem:[%s168 + $0x10] sm:$0xf] %v509
        %530 = vst [vmem:[%s168 + $0x14] sm:$0xf] %v510
        %531 = vst [vmem:[%s168 + $0x18] sm:$0xf] %v511
        %532 = vst [vmem:[%s168 + $0x1c] sm:$0xf] %v512
        %533 = vst [vmem:[%s168 + $0x20] sm:$0xf] %v513
        %534 = vst [vmem:[%s168 + $0x24] sm:$0xf] %v514
        %s535 = sand.u32 %s76, 1
        %s536 = scalar_lea.sflag [#allocation3], %s535
        %s537 = sand.u32 %s76, 1
        %s538 = smul.addr %s537, 40
        %s539 = scalar_lea.vmem [#allocation2], %s538
        %s540 = sand.u32 %s102, 1
        %s541 = scalar_lea.sflag [#allocation5], %s540
        %s542 = sand.u32 %s102, 1
        %s543 = scalar_lea.vmem [#allocation4], %s542
        // Predicated region
        $region29: #{tpu_custom_call.1} parent=27 // pred_check
          %p544 = pneg %p86
        $region30: #{tpu_custom_call.1} parent=27 // pred_check_branch
          %546 = sbr.rel (%p544) target = $region32
        $region31: #{tpu_custom_call.1} parent=27 // pred_region
          %s547 = smul.u32 10, %s21
          %s549 = ssub.s32 640, 640
          %550 = vsyncadd %s536, %s549
          %s551 = smul.addr %s547, 64
          %s552 = scalar_lea.hbm %s2, %s551
          %s553 = sshll.u32 %s539, 4
          %s554 = int_to_ptr.vmem [resolvable:$true] %s553
          %559 = dma.vmem_to_hbm [thread:$0]  %s554, 640, %s552, %s536, 64, 64, 4
        $region32: #{tpu_custom_call.1} parent=27 // pred_fallthru
          _
        // Predicated region
        $region33: #{tpu_custom_call.1} parent=27 // pred_check
          %p560 = pneg %p112
        $region34: #{tpu_custom_call.1} parent=27 // pred_check_branch
          %562 = sbr.rel (%p560) target = $region36
        $region35: #{tpu_custom_call.1} parent=27 // pred_region
          %s564 = ssub.s32 16, 16
          %565 = vsyncadd %s541, %s564
          %s566 = smul.addr %s21, 16
          %s567 = scalar_lea.hbm %s3, %s566
          %s569 = sshll.u32 %s543, 4
          %s570 = int_to_ptr.vmem [resolvable:$true] %s569
          %572 = dma.vmem_to_hbm [thread:$0]  %s570, 16, %s567, %s541
        $region36: #{tpu_custom_call.1} parent=27 // pred_fallthru
          _
      $region28: #{tpu_custom_call.1} parent=5 // pred_fallthru
        _
      %p573 = scmp.le.s32.totalorder 2, %s16
      // Predicated region
      $region37: #{tpu_custom_call.1} parent=5 // pred_check
        %p574 = pneg %p573
      $region38: #{tpu_custom_call.1} parent=5 // pred_check_branch
        %576 = sbr.rel (%p574) target = $region40
      $region39: #{tpu_custom_call.1} parent=5 // pred_region
        %s577 = ssub.s32 %s16, 2
        // Predicated region
        $region41: #{tpu_custom_call.1} parent=39 // pred_check
          %p578 = pneg %p92
        $region42: #{tpu_custom_call.1} parent=39 // pred_check_branch
          %580 = sbr.rel (%p578) target = $region44
        $region43: #{tpu_custom_call.1} parent=39 // pred_region
          %s581 = sand.u32 %s77, 1
          %s582 = scalar_lea.sflag [#allocation3], %s581
          %s583 = sand.u32 %s77, 1
          %s584 = smul.addr %s583, 40
          %s585 = scalar_lea.vmem [#allocation2], %s584
          %586 = dma.done %s582, 640
        $region44: #{tpu_custom_call.1} parent=39 // pred_fallthru
          _
        // Predicated region
        $region45: #{tpu_custom_call.1} parent=39 // pred_check
          %p587 = pneg %p118
        $region46: #{tpu_custom_call.1} parent=39 // pred_check_branch
          %589 = sbr.rel (%p587) target = $region48
        $region47: #{tpu_custom_call.1} parent=39 // pred_region
          %s590 = sand.u32 %s103, 1
          %s591 = scalar_lea.sflag [#allocation5], %s590
          %s592 = sand.u32 %s103, 1
          %s593 = scalar_lea.vmem [#allocation4], %s592
          %594 = dma.done %s591, 16
        $region48: #{tpu_custom_call.1} parent=39 // pred_fallthru
          _
      $region40: #{tpu_custom_call.1} parent=5 // pred_fallthru
        _
    $region6: #{tpu_custom_call.1} parent=1 // loop_footer
      %s20 = sadd.s32 1, %s16
    $region7: #{tpu_custom_call.1} parent=1 // loop_footer_branch
      %15 = sbr.rel target = $region3
    $region8: #{tpu_custom_call.1} parent=1 // loop_exit
      _
    %595 = vsyncpa [#allocation3], 1
    %s596 = scalar_lea.sflag [#allocation3], 1
    %597 = vsyncpa %s596, 1
    %598 = vsyncpa [#allocation5], 1
    %s599 = scalar_lea.sflag [#allocation5], 1
    %600 = vsyncpa %s599, 1

</llo_original>
